<compile_context>
chip_gen: v7x
topology: tpu7x:2x2x1
jax: 0.10.0
libtpu: 0.0.40
codegen_flags: <defaults>
</compile_context>

<pallas_src>
import jax
import jax.numpy as jnp
from jax.experimental import pallas as pl
from jax.experimental.pallas import tpu as pltpu


def basic_block_kernel(x_ref, shift_ref, w1_ref, w2_ref,
                       s1_ref, b1_ref, s2_ref, b2_ref, o_ref):
    # x_ref     : (M, W*Cin)          bf16 — BLK_N images' rows on sublanes,
    #                                  each image row flattened onto lanes.
    # shift_ref : (2, M, M)           bf16 block-diagonal row-select matrices
    #                                  (0: out[h] <- in[h-1], 1: out[h] <- in[h+1])
    # w1_ref    : (3*W*Cin,  W*Cout)  bf16 fused banded conv1 weights
    # w2_ref    : (3*W*Cout, W*Cout)  bf16 fused banded conv2 weights
    # s*/b*     : (1, W*Cout)         f32 folded BN scale / bias (pre-tiled)
    # o_ref     : (M, W*Cout)         bf16
    x2d = x_ref[...]                                  # (M, W*Cin) bf16
    sh_prev = shift_ref[0]                            # (M, M) bf16
    sh_next = shift_ref[1]

    def conv3x3(xin, w_ref):
        # Shift the bf16 input rows (exact 0/1 row selects; zero rows provide
        # the H padding and image-boundary isolation), then ONE fused
        # K = 3*W*Cin matmul covering all three kh taps (kw taps + W padding
        # are encoded inside the banded weights).
        x_prev = jnp.dot(sh_prev, xin,
                         preferred_element_type=jnp.float32).astype(jnp.bfloat16)
        x_next = jnp.dot(sh_next, xin,
                         preferred_element_type=jnp.float32).astype(jnp.bfloat16)
        x_cat = jnp.concatenate([x_prev, xin, x_next], axis=-1)
        return jnp.dot(x_cat, w_ref[...], preferred_element_type=jnp.float32)

    # conv1 -> bn1 -> relu
    out1 = conv3x3(x2d, w1_ref)
    out1 = jnp.maximum(out1 * s1_ref[...] + b1_ref[...], 0.0)

    # conv2 -> bn2
    out2 = conv3x3(out1.astype(jnp.bfloat16), w2_ref)
    out2 = out2 * s2_ref[...] + b2_ref[...]

    # residual add + relu
    # TODO(synk): residual uses the bf16-rounded input (systematic but tiny
    #             precision difference on the skip path vs. the f32 reference).
    y = jnp.maximum(out2 + x2d.astype(jnp.float32), 0.0)
    o_ref[...] = y.astype(o_ref.dtype)


def _fold_bn(params, eps):
    gamma, beta, mean, var = params
    scale = gamma / jnp.sqrt(var + eps)
    bias = beta - mean * scale
    return scale.astype(jnp.float32), bias.astype(jnp.float32)


def _band_weights(w_oihw, W):
    """PyTorch OIHW (Cout, Cin, 3, 3) -> banded (3, W*Cin, W*Cout) bf16.

    band[kh, w_in*Cin + ci, w_out*Cout + co] = w[kh, kw, ci, co] where
    w_in == w_out + kw - 1 (taps falling outside [0, W) are dropped, i.e.
    padding=1 along W).
    """
    Cout, Cin, _, _ = w_oihw.shape
    w = jnp.transpose(w_oihw, (2, 3, 1, 0)).astype(jnp.float32)  # (kh,kw,Ci,Co)
    sel = jnp.stack(
        [jnp.eye(W, W, k=1 - dx, dtype=jnp.float32) for dx in range(3)])
    band = jnp.einsum("dio,kdce->kicoe", sel, w).reshape(3, W * Cin, W * Cout)
    return band.astype(jnp.bfloat16)


def _shift_matrices(blk_n, H):
    """Block-diagonal (per-image) row shift-select matrices, bf16."""
    M = blk_n * H
    out_i = jnp.arange(M)[:, None]
    in_i = jnp.arange(M)[None, :]
    same_img = (out_i // H) == (in_i // H)
    prev = ((in_i == out_i - 1) & same_img).astype(jnp.bfloat16)  # x[h-1]
    nxt = ((in_i == out_i + 1) & same_img).astype(jnp.bfloat16)   # x[h+1]
    return jnp.stack([prev, nxt])                                 # (2, M, M)


def _pick_blk_n(N, H, target_rows=256):
    """Largest divisor of N with blk_n*H <= target_rows (MXU M-fill)."""
    best = 1
    for b in range(1, N + 1):
        if N % b == 0 and b * H <= target_rows:
            best = b
    return best


def basic_block_forward(x_nchw, w1, w2, bn1_params, bn2_params, eps=1e-5,
                        target_rows=256):
    """x_nchw: (N, C, H, W) f32.  w1/w2: (Cout, Cin, 3, 3) PyTorch layout."""
    N, C, H, W = x_nchw.shape
    Cout = w1.shape[0]
    assert Cout == C, "downsample=None requires inplanes == planes, stride == 1"
    WC, WCo = W * C, W * Cout
    # Note: W*C / W*Cout that are not multiples of 128 still work but hit
    # masked partial stores / lane padding (perf cliff, not a bug).

    blk_n = _pick_blk_n(N, H, target_rows)
    M = blk_n * H

    s1, b1 = _fold_bn(bn1_params, eps)
    s2, b2 = _fold_bn(bn2_params, eps)
    s1 = jnp.tile(s1, W).reshape(1, WCo)
    b1 = jnp.tile(b1, W).reshape(1, WCo)
    s2 = jnp.tile(s2, W).reshape(1, WCo)
    b2 = jnp.tile(b2, W).reshape(1, WCo)

    bw1 = _band_weights(w1, W).reshape(3 * WC, WCo)    # (3*W*C,    W*Cout) bf16
    bw2 = _band_weights(w2, W).reshape(3 * WCo, WCo)   # (3*W*Cout, W*Cout) bf16
    shifts = _shift_matrices(blk_n, H)                 # (2, M, M)          bf16

    # NCHW -> NHWC -> (N*H, W*C): channels-last rows flattened onto lanes.
    # TODO(synk): in a chain of blocks keep this flattened bf16 layout between
    #             blocks and drop the boundary NCHW<->NHWC transposes.
    x_rows = jnp.transpose(x_nchw, (0, 2, 3, 1)).reshape(N * H, WC)
    x_rows = x_rows.astype(jnp.bfloat16)

    flops = int(4 * (N * H) * (3 * WC) * WCo            # 2 fused conv matmuls
                + 8 * (N * H) * M * WC)                  # 4 small shift matmuls
    bytes_accessed = int(
        2 * (x_rows.size + N * H * WCo + bw1.size + bw2.size + shifts.size)
        + 4 * 4 * WCo)

    out_rows = pl.pallas_call(
        basic_block_kernel,
        out_shape=jax.ShapeDtypeStruct((N * H, WCo), jnp.bfloat16),
        grid_spec=pltpu.PrefetchScalarGridSpec(
            num_scalar_prefetch=0,
            grid=(N // blk_n,),
            in_specs=[
                pl.BlockSpec((M, WC), lambda i: (i, 0)),
                pl.BlockSpec((2, M, M), lambda i: (0, 0, 0)),
                pl.BlockSpec((3 * WC, WCo), lambda i: (0, 0)),
                pl.BlockSpec((3 * WCo, WCo), lambda i: (0, 0)),
                pl.BlockSpec((1, WCo), lambda i: (0, 0)),
                pl.BlockSpec((1, WCo), lambda i: (0, 0)),
                pl.BlockSpec((1, WCo), lambda i: (0, 0)),
                pl.BlockSpec((1, WCo), lambda i: (0, 0)),
            ],
            out_specs=pl.BlockSpec((M, WCo), lambda i: (i, 0)),
        ),
        compiler_params=pltpu.CompilerParams(
            dimension_semantics=("parallel",)),
        cost_estimate=pl.CostEstimate(
            flops=flops, transcendentals=0, bytes_accessed=bytes_accessed),
    )(x_rows, shifts, bw1, bw2, s1, b1, s2, b2)

    # (N*H, W*Cout) bf16 -> NHWC -> NCHW f32 (PyTorch interface for the demo).
    out_nhwc = out_rows.reshape(N, H, W, Cout)
    return jnp.transpose(out_nhwc, (0, 3, 1, 2)).astype(jnp.float32)


def _reference(x_nchw, w1, w2, bn1_params, bn2_params, eps=1e-5):
    """Pure-JAX f32 reference (lax.conv) for correctness check."""
    def conv(x, w):
        return jax.lax.conv_general_dilated(
            x, w, window_strides=(1, 1), padding=((1, 1), (1, 1)),
            dimension_numbers=("NCHW", "OIHW", "NCHW"))

    def bn(x, params):
        gamma, beta, mean, var = params
        scale = (gamma / jnp.sqrt(var + eps)).reshape(1, -1, 1, 1)
        bias = (beta - mean * gamma / jnp.sqrt(var + eps)).reshape(1, -1, 1, 1)
        return x * scale + bias

    out = jax.nn.relu(bn(conv(x_nchw, w1), bn1_params))
    out = bn(conv(out, w2), bn2_params)
    return jax.nn.relu(out + x_nchw)


if __name__ == "__main__":
    # Small shapes: batch=2, inplanes=planes=8, spatial=16x16 (so W*C = 128).
    N, C, H, W = 2, 8, 16, 16

    key = jax.random.PRNGKey(0)
    k = jax.random.split(key, 9)

    x = jax.random.normal(k[0], (N, C, H, W), jnp.float32)

    fan = C * 3 * 3
    w1 = jax.random.normal(k[1], (C, C, 3, 3), jnp.float32) * (2.0 / fan) ** 0.5
    w2 = jax.random.normal(k[2], (C, C, 3, 3), jnp.float32) * (2.0 / fan) ** 0.5

    bn1 = (1.0 + 0.1 * jax.random.normal(k[3], (C,), jnp.float32),   # gamma
           0.1 * jax.random.normal(k[4], (C,), jnp.float32),         # beta
           0.1 * jax.random.normal(k[5], (C,), jnp.float32),         # running_mean
           1.0 + 0.1 * jax.random.uniform(k[6], (C,), jnp.float32))  # running_var
    bn2 = (1.0 + 0.1 * jax.random.normal(k[7], (C,), jnp.float32),
           0.1 * jax.random.normal(k[8], (C,), jnp.float32),
           jnp.zeros((C,), jnp.float32),
           jnp.ones((C,), jnp.float32))

    out = basic_block_forward(x, w1, w2, bn1, bn2)
    out = jax.block_until_ready(out)

    ref = _reference(x, w1, w2, bn1, bn2)
    assert out.shape == (N, C, H, W)

    # bf16 operands / bf16 output (f32 accumulation) -> scale-relative
    # tolerance against the f32 reference.
    max_err = float(jnp.max(jnp.abs(out - ref)))
    max_ref = float(jnp.max(jnp.abs(ref)))
    assert max_err <= 0.02 * max_ref + 1e-2, \
        f"max abs err {max_err} vs max |ref| {max_ref}"

    print("KERNEL_OK")
</pallas_src>

<mosaic_0001>
module attributes {stable_mosaic.version = 11 : i64} {
  func.func @basic_block_kernel(%arg0: i32, %arg1: memref<32x128xbf16, #tpu.memory_space<vmem>>, %arg2: memref<2x32x32xbf16, #tpu.memory_space<vmem>>, %arg3: memref<384x128xbf16, #tpu.memory_space<vmem>>, %arg4: memref<384x128xbf16, #tpu.memory_space<vmem>>, %arg5: memref<1x128xf32, #tpu.memory_space<vmem>>, %arg6: memref<1x128xf32, #tpu.memory_space<vmem>>, %arg7: memref<1x128xf32, #tpu.memory_space<vmem>>, %arg8: memref<1x128xf32, #tpu.memory_space<vmem>>, %arg9: memref<32x128xbf16, #tpu.memory_space<vmem>>) attributes {dimension_semantics = [#tpu.dimension_semantics<parallel>], iteration_bounds = array<i64: 1>, scalar_prefetch = 0 : i64, scratch_operands = 0 : i64, tpu.core_type = #tpu.core_type<tc>, window_params = [{transform_indices = @transform_0, window_bounds = array<i64: 32, 128>}, {pipeline_mode = #tpu.pipeline_mode<synchronous>, transform_indices = @transform_1, window_bounds = array<i64: 2, 32, 32>}, {pipeline_mode = #tpu.pipeline_mode<synchronous>, transform_indices = @transform_2, window_bounds = array<i64: 384, 128>}, {pipeline_mode = #tpu.pipeline_mode<synchronous>, transform_indices = @transform_3, window_bounds = array<i64: 384, 128>}, {pipeline_mode = #tpu.pipeline_mode<synchronous>, transform_indices = @transform_4, window_bounds = array<i64: 1, 128>}, {pipeline_mode = #tpu.pipeline_mode<synchronous>, transform_indices = @transform_5, window_bounds = array<i64: 1, 128>}, {pipeline_mode = #tpu.pipeline_mode<synchronous>, transform_indices = @transform_6, window_bounds = array<i64: 1, 128>}, {pipeline_mode = #tpu.pipeline_mode<synchronous>, transform_indices = @transform_7, window_bounds = array<i64: 1, 128>}, {transform_indices = @transform_8, window_bounds = array<i64: 32, 128>}]} {
    %c0 = arith.constant 0 : index
    %c0_0 = arith.constant 0 : index
    %0 = vector.load %arg1[%c0, %c0_0] : memref<32x128xbf16, #tpu.memory_space<vmem>>, vector<32x128xbf16>
    %c0_1 = arith.constant 0 : index
    %c0_2 = arith.constant 0 : index
    %c0_3 = arith.constant 0 : index
    %1 = vector.load %arg2[%c0_1, %c0_2, %c0_3] : memref<2x32x32xbf16, #tpu.memory_space<vmem>>, vector<1x32x32xbf16>
    %2 = vector.shape_cast %1 : vector<1x32x32xbf16> to vector<32x32xbf16>
    %c1 = arith.constant 1 : index
    %c0_4 = arith.constant 0 : index
    %c0_5 = arith.constant 0 : index
    %3 = vector.load %arg2[%c1, %c0_4, %c0_5] : memref<2x32x32xbf16, #tpu.memory_space<vmem>>, vector<1x32x32xbf16>
    %4 = vector.shape_cast %3 : vector<1x32x32xbf16> to vector<32x32xbf16>
    %cst = arith.constant dense<0.000000e+00> : vector<32x128xf32>
    %5 = tpu.matmul %2, %0, %cst {dimension_numbers = #tpu.dot_dimension_numbers<[1], [0], [0], [1], [0, 0, 1, 1], [], []>} : vector<32x32xbf16>, vector<32x128xbf16>, vector<32x128xf32> -> vector<32x128xf32>
    %6 = arith.truncf %5 : vector<32x128xf32> to vector<32x128xbf16>
    %cst_6 = arith.constant dense<0.000000e+00> : vector<32x128xf32>
    %7 = tpu.matmul %4, %0, %cst_6 {dimension_numbers = #tpu.dot_dimension_numbers<[1], [0], [0], [1], [0, 0, 1, 1], [], []>} : vector<32x32xbf16>, vector<32x128xbf16>, vector<32x128xf32> -> vector<32x128xf32>
    %8 = arith.truncf %7 : vector<32x128xf32> to vector<32x128xbf16>
    %9 = tpu.concatenate %6, %0, %8 in 1 : vector<32x128xbf16>, vector<32x128xbf16>, vector<32x128xbf16> -> vector<32x384xbf16>
    %c0_7 = arith.constant 0 : index
    %c0_8 = arith.constant 0 : index
    %10 = vector.load %arg3[%c0_7, %c0_8] : memref<384x128xbf16, #tpu.memory_space<vmem>>, vector<384x128xbf16>
    %cst_9 = arith.constant dense<0.000000e+00> : vector<32x128xf32>
    %11 = tpu.matmul %9, %10, %cst_9 {dimension_numbers = #tpu.dot_dimension_numbers<[1], [0], [0], [1], [0, 0, 1, 1], [], []>} : vector<32x384xbf16>, vector<384x128xbf16>, vector<32x128xf32> -> vector<32x128xf32>
    %c0_10 = arith.constant 0 : index
    %c0_11 = arith.constant 0 : index
    %12 = vector.load %arg5[%c0_10, %c0_11] : memref<1x128xf32, #tpu.memory_space<vmem>>, vector<1x128xf32>
    %13 = vector.broadcast %12 : vector<1x128xf32> to vector<32x128xf32>
    %14 = arith.mulf %11, %13 : vector<32x128xf32>
    %c0_12 = arith.constant 0 : index
    %c0_13 = arith.constant 0 : index
    %15 = vector.load %arg6[%c0_12, %c0_13] : memref<1x128xf32, #tpu.memory_space<vmem>>, vector<1x128xf32>
    %16 = vector.broadcast %15 : vector<1x128xf32> to vector<32x128xf32>
    %17 = arith.addf %14, %16 : vector<32x128xf32>
    %cst_14 = arith.constant 0.000000e+00 : f32
    %18 = vector.broadcast %cst_14 : f32 to vector<32x128xf32>
    %19 = arith.maximumf %17, %18 : vector<32x128xf32>
    %20 = arith.truncf %19 : vector<32x128xf32> to vector<32x128xbf16>
    %cst_15 = arith.constant dense<0.000000e+00> : vector<32x128xf32>
    %21 = tpu.matmul %2, %20, %cst_15 {dimension_numbers = #tpu.dot_dimension_numbers<[1], [0], [0], [1], [0, 0, 1, 1], [], []>} : vector<32x32xbf16>, vector<32x128xbf16>, vector<32x128xf32> -> vector<32x128xf32>
    %22 = arith.truncf %21 : vector<32x128xf32> to vector<32x128xbf16>
    %cst_16 = arith.constant dense<0.000000e+00> : vector<32x128xf32>
    %23 = tpu.matmul %4, %20, %cst_16 {dimension_numbers = #tpu.dot_dimension_numbers<[1], [0], [0], [1], [0, 0, 1, 1], [], []>} : vector<32x32xbf16>, vector<32x128xbf16>, vector<32x128xf32> -> vector<32x128xf32>
    %24 = arith.truncf %23 : vector<32x128xf32> to vector<32x128xbf16>
    %25 = tpu.concatenate %22, %20, %24 in 1 : vector<32x128xbf16>, vector<32x128xbf16>, vector<32x128xbf16> -> vector<32x384xbf16>
    %c0_17 = arith.constant 0 : index
    %c0_18 = arith.constant 0 : index
    %26 = vector.load %arg4[%c0_17, %c0_18] : memref<384x128xbf16, #tpu.memory_space<vmem>>, vector<384x128xbf16>
    %cst_19 = arith.constant dense<0.000000e+00> : vector<32x128xf32>
    %27 = tpu.matmul %25, %26, %cst_19 {dimension_numbers = #tpu.dot_dimension_numbers<[1], [0], [0], [1], [0, 0, 1, 1], [], []>} : vector<32x384xbf16>, vector<384x128xbf16>, vector<32x128xf32> -> vector<32x128xf32>
    %c0_20 = arith.constant 0 : index
    %c0_21 = arith.constant 0 : index
    %28 = vector.load %arg7[%c0_20, %c0_21] : memref<1x128xf32, #tpu.memory_space<vmem>>, vector<1x128xf32>
    %29 = vector.broadcast %28 : vector<1x128xf32> to vector<32x128xf32>
    %30 = arith.mulf %27, %29 : vector<32x128xf32>
    %c0_22 = arith.constant 0 : index
    %c0_23 = arith.constant 0 : index
    %31 = vector.load %arg8[%c0_22, %c0_23] : memref<1x128xf32, #tpu.memory_space<vmem>>, vector<1x128xf32>
    %32 = vector.broadcast %31 : vector<1x128xf32> to vector<32x128xf32>
    %33 = arith.addf %30, %32 : vector<32x128xf32>
    %34 = arith.extf %0 : vector<32x128xbf16> to vector<32x128xf32>
    %35 = arith.addf %33, %34 : vector<32x128xf32>
    %cst_24 = arith.constant 0.000000e+00 : f32
    %36 = vector.broadcast %cst_24 : f32 to vector<32x128xf32>
    %37 = arith.maximumf %35, %36 : vector<32x128xf32>
    %38 = arith.truncf %37 : vector<32x128xf32> to vector<32x128xbf16>
    %c0_25 = arith.constant 0 : index
    %c0_26 = arith.constant 0 : index
    %39 = vector.load %arg9[%c0_25, %c0_26] : memref<32x128xbf16, #tpu.memory_space<vmem>>, vector<32x128xbf16>
    tpu.vector_store %arg9[%c0_25, %c0_26], %38 {strides = array<i32>} : memref<32x128xbf16, #tpu.memory_space<vmem>>, vector<32x128xbf16>,
    return
  }
  func.func @transform_0(%arg0: i32) -> (i32, i32) {
    %c0_i32 = arith.constant 0 : i32
    %c0_i32_0 = arith.constant 0 : i32
    return %arg0, %c0_i32 : i32, i32
  }
  func.func @transform_1(%arg0: i32) -> (i32, i32, i32) {
    %c0_i32 = arith.constant 0 : i32
    %c0_i32_0 = arith.constant 0 : i32
    %c0_i32_1 = arith.constant 0 : i32
    %c0_i32_2 = arith.constant 0 : i32
    return %c0_i32, %c0_i32_0, %c0_i32_1 : i32, i32, i32
  }
  func.func @transform_2(%arg0: i32) -> (i32, i32) {
    %c0_i32 = arith.constant 0 : i32
    %c0_i32_0 = arith.constant 0 : i32
    %c0_i32_1 = arith.constant 0 : i32
    return %c0_i32, %c0_i32_0 : i32, i32
  }
  func.func @transform_3(%arg0: i32) -> (i32, i32) {
    %c0_i32 = arith.constant 0 : i32
    %c0_i32_0 = arith.constant 0 : i32
    %c0_i32_1 = arith.constant 0 : i32
    return %c0_i32, %c0_i32_0 : i32, i32
  }
  func.func @transform_4(%arg0: i32) -> (i32, i32) {
    %c0_i32 = arith.constant 0 : i32
    %c0_i32_0 = arith.constant 0 : i32
    %c0_i32_1 = arith.constant 0 : i32
    return %c0_i32, %c0_i32_0 : i32, i32
  }
  func.func @transform_5(%arg0: i32) -> (i32, i32) {
    %c0_i32 = arith.constant 0 : i32
    %c0_i32_0 = arith.constant 0 : i32
    %c0_i32_1 = arith.constant 0 : i32
    return %c0_i32, %c0_i32_0 : i32, i32
  }
  func.func @transform_6(%arg0: i32) -> (i32, i32) {
    %c0_i32 = arith.constant 0 : i32
    %c0_i32_0 = arith.constant 0 : i32
    %c0_i32_1 = arith.constant 0 : i32
    return %c0_i32, %c0_i32_0 : i32, i32
  }
  func.func @transform_7(%arg0: i32) -> (i32, i32) {
    %c0_i32 = arith.constant 0 : i32
    %c0_i32_0 = arith.constant 0 : i32
    %c0_i32_1 = arith.constant 0 : i32
    return %c0_i32, %c0_i32_0 : i32, i32
  }
  func.func @transform_8(%arg0: i32) -> (i32, i32) {
    %c0_i32 = arith.constant 0 : i32
    %c0_i32_0 = arith.constant 0 : i32
    return %arg0, %c0_i32 : i32, i32
  }
}

</mosaic_0001>

<llo_original>
// kernel: tpu_custom_call.1
$region0: #{tpu_custom_call.1}
  #allocation0 [shape = 'u32[]', space=smem, size = 0x4, offset = 0x4, fixed_abs, tag = 'smem constant byte address 0x4 - core index']
  #allocation1 [shape = 'u32[144,128]{1,0:T(1,128)}', space=vmem, size = 0x12000, scoped, tag = 'internal scratch']
  %s0 = inlined_call_operand.hbm [shape: bf16[32,128], index: 0, kind: input, shape index: {}]
  %s1 = inlined_call_operand.hbm [shape: bf16[2,32,32], index: 1, kind: input, shape index: {}]
  %s2 = inlined_call_operand.hbm [shape: bf16[384,128], index: 2, kind: input, shape index: {}]
  %s3 = inlined_call_operand.hbm [shape: bf16[384,128], index: 3, kind: input, shape index: {}]
  %s4 = inlined_call_operand.vmem [shape: f32[1,128], index: 4, kind: input, shape index: {}]
  %s5 = inlined_call_operand.vmem [shape: f32[1,128], index: 5, kind: input, shape index: {}]
  %s6 = inlined_call_operand.vmem [shape: f32[1,128], index: 6, kind: input, shape index: {}]
  %s7 = inlined_call_operand.vmem [shape: f32[1,128], index: 7, kind: input, shape index: {}]
  %s8 = inlined_call_operand.hbm [shape: bf16[32,128], index: 8, kind: output, shape index: {}]
  %s9 = sld [smem:[#allocation0]]
  $region58: #{tpu_custom_call.1} parent=0
    _
  %s11 = ssub.s32 1, %s9
  %s12 = scalar_select 0, %s11, %s9
  $region1: #{tpu_custom_call.1} parent=0
    #allocation2 [shape = 'u8[8192]{0}', space=vmem, size = 0x2000, scoped, tag = 'input window, operand 0, single buffered']
    #allocation3 [shape = 's32[1]{0}', space=sflag, size = 0x4, scoped, tag = 'scoped memory for tpu_custom_call.1']
    #allocation4 [shape = 's32[1]{0}', space=sflag, size = 0x4, scoped, tag = 'scoped memory for tpu_custom_call.1']
    #allocation5 [shape = 'u8[16384]{0}', space=vmem, size = 0x4000, scoped, tag = 'input window, operand 1, single buffered']
    #allocation6 [shape = 's32[1]{0}', space=sflag, size = 0x4, scoped, tag = 'scoped memory for tpu_custom_call.1']
    #allocation7 [shape = 'u8[98304]{0}', space=vmem, size = 0x18000, scoped, tag = 'input window, operand 2, single buffered']
    #allocation8 [shape = 'u8[98304]{0}', space=vmem, size = 0x18000, scoped, tag = 'input window, operand 3, single buffered']
    #allocation9 [shape = 's32[1]{0}', space=sflag, size = 0x4, scoped, tag = 'scoped memory for tpu_custom_call.1']
    #allocation10 [shape = 'u8[8192]{0}', space=vmem, size = 0x2000, scoped, tag = 'output window, operand 0, single buffered']
    %13 = vsyncpa [#allocation3], 0
    %14 = vsyncpa [#allocation6], 0
    %15 = vsyncpa [#allocation9], 0
    %16 = vsyncpa [#allocation4], 0
    // Predicated region
    $region2: #{tpu_custom_call.1} parent=1 // pred_check
      _
    $region3: #{tpu_custom_call.1} parent=1 // pred_check_branch
      %18 = sbr.rel (0) target = $region5
    $region4: #{tpu_custom_call.1} parent=1 // pred_region
      %s20 = ssub.s32 256, 256
      %21 = vsyncadd [#allocation3], %s20
      %s22 = sshll.u32 [#allocation2], 4
      %s23 = int_to_ptr.vmem [resolvable:$true] %s22
      %28 = dma.hbm_to_vmem [thread:$0]  %s0, 256, %s23, [#allocation3], 64, 64, 4
    $region5: #{tpu_custom_call.1} parent=1 // pred_fallthru
      _
    // Predicated region
    $region6: #{tpu_custom_call.1} parent=1 // pred_check
      _
    $region7: #{tpu_custom_call.1} parent=1 // pred_check_branch
      %30 = sbr.rel (0) target = $region9
    $region8: #{tpu_custom_call.1} parent=1 // pred_region
      %s32 = ssub.s32 512, 512
      %33 = vsyncadd [#allocation6], %s32
      %s34 = sshll.u32 [#allocation5], 4
      %s35 = int_to_ptr.vmem [resolvable:$true] %s34
      %40 = dma.hbm_to_vmem [thread:$0]  %s1, 512, %s35, [#allocation6], 64, 64, 4
    $region9: #{tpu_custom_call.1} parent=1 // pred_fallthru
      _
    // Predicated region
    $region10: #{tpu_custom_call.1} parent=1 // pred_check
      _
    $region11: #{tpu_custom_call.1} parent=1 // pred_check_branch
      %42 = sbr.rel (0) target = $region13
    $region12: #{tpu_custom_call.1} parent=1 // pred_region
      %s44 = ssub.s32 3072, 3072
      %45 = vsyncadd [#allocation6], %s44
      %s46 = sshll.u32 [#allocation7], 4
      %s47 = int_to_ptr.vmem [resolvable:$true] %s46
      %52 = dma.hbm_to_vmem [thread:$0]  %s2, 3072, %s47, [#allocation6], 64, 64, 4
    $region13: #{tpu_custom_call.1} parent=1 // pred_fallthru
      _
    // Predicated region
    $region14: #{tpu_custom_call.1} parent=1 // pred_check
      _
    $region15: #{tpu_custom_call.1} parent=1 // pred_check_branch
      %54 = sbr.rel (0) target = $region17
    $region16: #{tpu_custom_call.1} parent=1 // pred_region
      %s56 = ssub.s32 3072, 3072
      %57 = vsyncadd [#allocation9], %s56
      %s58 = sshll.u32 [#allocation8], 4
      %s59 = int_to_ptr.vmem [resolvable:$true] %s58
      %64 = dma.hbm_to_vmem [thread:$0]  %s3, 3072, %s59, [#allocation9], 64, 64, 4
    $region17: #{tpu_custom_call.1} parent=1 // pred_fallthru
      _
    // Predicated region
    $region18: #{tpu_custom_call.1} parent=1 // pred_check
      _
    $region19: #{tpu_custom_call.1} parent=1 // pred_check_branch
      %66 = sbr.rel (0) target = $region21
    $region20: #{tpu_custom_call.1} parent=1 // pred_region
      _
    $region21: #{tpu_custom_call.1} parent=1 // pred_fallthru
      _
    // Predicated region
    $region22: #{tpu_custom_call.1} parent=1 // pred_check
      _
    $region23: #{tpu_custom_call.1} parent=1 // pred_check_branch
      %68 = sbr.rel (0) target = $region25
    $region24: #{tpu_custom_call.1} parent=1 // pred_region
      _
    $region25: #{tpu_custom_call.1} parent=1 // pred_fallthru
      _
    // Predicated region
    $region26: #{tpu_custom_call.1} parent=1 // pred_check
      _
    $region27: #{tpu_custom_call.1} parent=1 // pred_check_branch
      %70 = sbr.rel (0) target = $region29
    $region28: #{tpu_custom_call.1} parent=1 // pred_region
      _
    $region29: #{tpu_custom_call.1} parent=1 // pred_fallthru
      _
    // Predicated region
    $region30: #{tpu_custom_call.1} parent=1 // pred_check
      _
    $region31: #{tpu_custom_call.1} parent=1 // pred_check_branch
      %72 = sbr.rel (0) target = $region33
    $region32: #{tpu_custom_call.1} parent=1 // pred_region
      _
    $region33: #{tpu_custom_call.1} parent=1 // pred_fallthru
      _
    // Predicated region
    $region34: #{tpu_custom_call.1} parent=1 // pred_check
      _
    $region35: #{tpu_custom_call.1} parent=1 // pred_check_branch
      %74 = sbr.rel (0) target = $region37
    $region36: #{tpu_custom_call.1} parent=1 // pred_region
      %75 = dma.done [#allocation3], 256
    $region37: #{tpu_custom_call.1} parent=1 // pred_fallthru
      _
    // Predicated region
    $region38: #{tpu_custom_call.1} parent=1 // pred_check
      _
    $region39: #{tpu_custom_call.1} parent=1 // pred_check_branch
      %77 = sbr.rel (0) target = $region41
    $region40: #{tpu_custom_call.1} parent=1 // pred_region
      %78 = dma.done [#allocation6], 512
    $region41: #{tpu_custom_call.1} parent=1 // pred_fallthru
      _
    // Predicated region
    $region42: #{tpu_custom_call.1} parent=1 // pred_check
      _
    $region43: #{tpu_custom_call.1} parent=1 // pred_check_branch
      %80 = sbr.rel (0) target = $region45
    $region44: #{tpu_custom_call.1} parent=1 // pred_region
      %81 = dma.done [#allocation6], 3072
    $region45: #{tpu_custom_call.1} parent=1 // pred_fallthru
      _
    // Predicated region
    $region46: #{tpu_custom_call.1} parent=1 // pred_check
      _
    $region47: #{tpu_custom_call.1} parent=1 // pred_check_branch
      %83 = sbr.rel (0) target = $region49
    $region48: #{tpu_custom_call.1} parent=1 // pred_region
      %84 = dma.done [#allocation9], 3072
    $region49: #{tpu_custom_call.1} parent=1 // pred_fallthru
      _
    %v86 = vld [vmem:[#allocation2] sm:$0xf]
    %v87 = vld [vmem:[#allocation2 + $0x4] sm:$0xf]
    %v88 = vld [vmem:[#allocation2 + $0x8] sm:$0xf]
    %v89 = vld [vmem:[#allocation2 + $0xc] sm:$0xf]
    %v90 = vld [vmem:[#allocation5] sm:$0xf]
    %v91 = vld [vmem:[#allocation5 + $0x4] sm:$0xf]
    %v92 = vld [vmem:[#allocation5 + $0x8] sm:$0xf]
    %v93 = vld [vmem:[#allocation5 + $0xc] sm:$0xf]
    %s94 = scalar_lea.vmem [#allocation5], 16
    %v95 = vld [vmem:[%s94] sm:$0xf]
    %v96 = vld [vmem:[%s94 + $0x4] sm:$0xf]
    %v97 = vld [vmem:[%s94 + $0x8] sm:$0xf]
    %v98 = vld [vmem:[%s94 + $0xc] sm:$0xf]
    %v103 = vunpack.c.l.b16 %v90
    %v104 = vunpack.c.l.b16 %v91
    %v105 = vunpack.c.l.b16 %v92
    %v106 = vunpack.c.l.b16 %v93
    %v107 = vpack.c.b16 %v104, %v103
    %v108 = vpack.c.b16 %v106, %v105
    %v113 = vunpack.c.l.b16 %v86
    %v114 = vunpack.c.l.b16 %v87
    %v115 = vunpack.c.l.b16 %v88
    %v116 = vunpack.c.l.b16 %v89
    %v117 = vpack.c.b16 %v114, %v113
    %v118 = vpack.c.b16 %v116, %v115
    %vm121 = vcmask 261120
    %v123 = vsel %vm121, %v107, 0
    %v126 = vsel %vm121, %v108, 0
    %128 = vmatprep.subr.bf16.mxu0 0
    %129 = vmatpush1.bf16.msra.mxu0 %v117
    %130 = vmatprep.subr.bf16.mxu0 0
    %131 = vmatpush1.bf16.msra.mxu0 %v118
    %132 = vmatprep.subr.bf16.mxu0 0
    %133 = vmatpush1.bf16.msra.mxu0 0
    %134 = vmatprep.subr.bf16.mxu0 0
    %135 = vmatpush1.bf16.msra.mxu0 0
    %136 = vmatprep.subr.bf16.mxu0 0
    %137 = vmatpush1.bf16.msra.mxu0 0
    %138 = vmatprep.subr.bf16.mxu0 0
    %139 = vmatpush1.bf16.msra.mxu0 0
    %140 = vmatprep.subr.bf16.mxu0 0
    %141 = vmatpush1.bf16.msra.mxu0 0
    %142 = vmatprep.subr.bf16.mxu0 0
    %143 = vmatpush1.bf16.msra.mxu0 0
    %144 = vmatprep.subr.bf16.mxu0 0
    %145 = vmatpush1.bf16.msra.mxu0 0
    %146 = vmatprep.subr.bf16.mxu0 0
    %147 = vmatpush1.bf16.msra.mxu0 0
    %148 = vmatprep.subr.bf16.mxu0 0
    %149 = vmatpush1.bf16.msra.mxu0 0
    %150 = vmatprep.subr.bf16.mxu0 0
    %151 = vmatpush1.bf16.msra.mxu0 0
    %152 = vmatprep.subr.bf16.mxu0 0
    %153 = vmatpush1.bf16.msra.mxu0 0
    %154 = vmatprep.subr.bf16.mxu0 0
    %155 = vmatpush1.bf16.msra.mxu0 0
    %156 = vmatprep.subr.bf16.mxu0 0
    %157 = vmatpush1.bf16.msra.mxu0 0
    %158 = vmatprep.subr.bf16.mxu0 0
    %159 = vmatpush1.bf16.msra.mxu0 0
    %160 = vmatprep.mubr.bf16.mxu0 0
    %161 = vmatmul.mubr.bf16.gmra.mrb[0].mxu0 %v123
    %v162 = vpop.f32.mrb[0].mxu0
    %v163 = vadd.f32 0.0, %v162
    %v164 = vpop.f32.mrb[0].mxu0
    %v165 = vpop.f32.mrb[0].mxu0
    %v166 = vadd.f32 0.0, %v165
    %v167 = vpop.f32.mrb[0].mxu0
    %168 = vmatprep.mubr.bf16.mxu0 0
    %169 = vmatmul.mubr.bf16.gmra.mrb[0].mxu0 %v126
    %v170 = vpop.f32.mrb[0].mxu0
    %v171 = vadd.f32 0.0, %v170
    %v172 = vpop.f32.mrb[0].mxu0
    %v173 = vpop.f32.mrb[0].mxu0
    %v174 = vadd.f32 0.0, %v173
    %v175 = vpop.f32.mrb[0].mxu0
    %176 = vdwg.mxu0
    %v177 = vpack.c.bf16 %v166, %v163
    %v178 = vpack.c.bf16 %v174, %v171
    %v183 = vunpack.c.l.b16 %v95
    %v184 = vunpack.c.l.b16 %v96
    %v185 = vunpack.c.l.b16 %v97
    %v186 = vunpack.c.l.b16 %v98
    %v187 = vpack.c.b16 %v184, %v183
    %v188 = vpack.c.b16 %v186, %v185
    %v190 = vsel %vm121, %v187, 0
    %v193 = vsel %vm121, %v188, 0
    %195 = vmatprep.subr.bf16.mxu0 0
    %196 = vmatpush1.bf16.msra.mxu0 %v117
    %197 = vmatprep.subr.bf16.mxu0 0
    %198 = vmatpush1.bf16.msra.mxu0 %v118
    %199 = vmatprep.subr.bf16.mxu0 0
    %200 = vmatpush1.bf16.msra.mxu0 0
    %201 = vmatprep.subr.bf16.mxu0 0
    %202 = vmatpush1.bf16.msra.mxu0 0
    %203 = vmatprep.subr.bf16.mxu0 0
    %204 = vmatpush1.bf16.msra.mxu0 0
    %205 = vmatprep.subr.bf16.mxu0 0
    %206 = vmatpush1.bf16.msra.mxu0 0
    %207 = vmatprep.subr.bf16.mxu0 0
    %208 = vmatpush1.bf16.msra.mxu0 0
    %209 = vmatprep.subr.bf16.mxu0 0
    %210 = vmatpush1.bf16.msra.mxu0 0
    %211 = vmatprep.subr.bf16.mxu0 0
    %212 = vmatpush1.bf16.msra.mxu0 0
    %213 = vmatprep.subr.bf16.mxu0 0
    %214 = vmatpush1.bf16.msra.mxu0 0
    %215 = vmatprep.subr.bf16.mxu0 0
    %216 = vmatpush1.bf16.msra.mxu0 0
    %217 = vmatprep.subr.bf16.mxu0 0
    %218 = vmatpush1.bf16.msra.mxu0 0
    %219 = vmatprep.subr.bf16.mxu0 0
    %220 = vmatpush1.bf16.msra.mxu0 0
    %221 = vmatprep.subr.bf16.mxu0 0
    %222 = vmatpush1.bf16.msra.mxu0 0
    %223 = vmatprep.subr.bf16.mxu0 0
    %224 = vmatpush1.bf16.msra.mxu0 0
    %225 = vmatprep.subr.bf16.mxu0 0
    %226 = vmatpush1.bf16.msra.mxu0 0
    %227 = vmatprep.mubr.bf16.mxu0 0
    %228 = vmatmul.mubr.bf16.gmra.mrb[0].mxu0 %v190
    %v229 = vpop.f32.mrb[0].mxu0
    %v230 = vadd.f32 0.0, %v229
    %v231 = vpop.f32.mrb[0].mxu0
    %v232 = vpop.f32.mrb[0].mxu0
    %v233 = vadd.f32 0.0, %v232
    %v234 = vpop.f32.mrb[0].mxu0
    %235 = vmatprep.mubr.bf16.mxu0 0
    %236 = vmatmul.mubr.bf16.gmra.mrb[0].mxu0 %v193
    %v237 = vpop.f32.mrb[0].mxu0
    %v238 = vadd.f32 0.0, %v237
    %v239 = vpop.f32.mrb[0].mxu0
    %v240 = vpop.f32.mrb[0].mxu0
    %v241 = vadd.f32 0.0, %v240
    %v242 = vpop.f32.mrb[0].mxu0
    %243 = vdwg.mxu0
    %v244 = vpack.c.bf16 %v233, %v230
    %v245 = vpack.c.bf16 %v241, %v238
    %v246 = vld [vmem:[#allocation7] sm:$0xf]
    %v247 = vld [vmem:[#allocation7 + $0x4] sm:$0xf]
    %v248 = vld [vmem:[#allocation7 + $0x8] sm:$0xf]
    %v249 = vld [vmem:[#allocation7 + $0xc] sm:$0xf]
    %v250 = vld [vmem:[#allocation7 + $0x10] sm:$0xf]
    %v251 = vld [vmem:[#allocation7 + $0x14] sm:$0xf]
    %v252 = vld [vmem:[#allocation7 + $0x18] sm:$0xf]
    %v253 = vld [vmem:[#allocation7 + $0x1c] sm:$0xf]
    %v254 = vld [vmem:[#allocation7 + $0x20] sm:$0xf]
    %v255 = vld [vmem:[#allocation7 + $0x24] sm:$0xf]
    %v256 = vld [vmem:[#allocation7 + $0x28] sm:$0xf]
    %v257 = vld [vmem:[#allocation7 + $0x2c] sm:$0xf]
    %v258 = vld [vmem:[#allocation7 + $0x30] sm:$0xf]
    %v259 = vld [vmem:[#allocation7 + $0x34] sm:$0xf]
    %v260 = vld [vmem:[#allocation7 + $0x38] sm:$0xf]
    %v261 = vld [vmem:[#allocation7 + $0x3c] sm:$0xf]
    %v262 = vld [vmem:[#allocation7 + $0x40] sm:$0xf]
    %v263 = vld [vmem:[#allocation7 + $0x44] sm:$0xf]
    %v264 = vld [vmem:[#allocation7 + $0x48] sm:$0xf]
    %v265 = vld [vmem:[#allocation7 + $0x4c] sm:$0xf]
    %v266 = vld [vmem:[#allocation7 + $0x50] sm:$0xf]
    %v267 = vld [vmem:[#allocation7 + $0x54] sm:$0xf]
    %v268 = vld [vmem:[#allocation7 + $0x58] sm:$0xf]
    %v269 = vld [vmem:[#allocation7 + $0x5c] sm:$0xf]
    %v270 = vld [vmem:[#allocation7 + $0x60] sm:$0xf]
    %v271 = vld [vmem:[#allocation7 + $0x64] sm:$0xf]
    %v272 = vld [vmem:[#allocation7 + $0x68] sm:$0xf]
    %v273 = vld [vmem:[#allocation7 + $0x6c] sm:$0xf]
    %v274 = vld [vmem:[#allocation7 + $0x70] sm:$0xf]
    %v275 = vld [vmem:[#allocation7 + $0x74] sm:$0xf]
    %v276 = vld [vmem:[#allocation7 + $0x78] sm:$0xf]
    %v277 = vld [vmem:[#allocation7 + $0x7c] sm:$0xf]
    %v278 = vld [vmem:[#allocation7 + $0x80] sm:$0xf]
    %v279 = vld [vmem:[#allocation7 + $0x84] sm:$0xf]
    %v280 = vld [vmem:[#allocation7 + $0x88] sm:$0xf]
    %v281 = vld [vmem:[#allocation7 + $0x8c] sm:$0xf]
    %v282 = vld [vmem:[#allocation7 + $0x90] sm:$0xf]
    %v283 = vld [vmem:[#allocation7 + $0x94] sm:$0xf]
    %v284 = vld [vmem:[#allocation7 + $0x98] sm:$0xf]
    %v285 = vld [vmem:[#allocation7 + $0x9c] sm:$0xf]
    %v286 = vld [vmem:[#allocation7 + $0xa0] sm:$0xf]
    %v287 = vld [vmem:[#allocation7 + $0xa4] sm:$0xf]
    %v288 = vld [vmem:[#allocation7 + $0xa8] sm:$0xf]
    %v289 = vld [vmem:[#allocation7 + $0xac] sm:$0xf]
    %v290 = vld [vmem:[#allocation7 + $0xb0] sm:$0xf]
    %v291 = vld [vmem:[#allocation7 + $0xb4] sm:$0xf]
    %v292 = vld [vmem:[#allocation7 + $0xb8] sm:$0xf]
    %v293 = vld [vmem:[#allocation7 + $0xbc] sm:$0xf]
    %v342 = vunpack.c.l.b16 %v246
    %v343 = vunpack.c.l.b16 %v247
    %v344 = vunpack.c.l.b16 %v248
    %v345 = vunpack.c.l.b16 %v249
    %v346 = vunpack.c.l.b16 %v250
    %v347 = vunpack.c.l.b16 %v251
    %v348 = vunpack.c.l.b16 %v252
    %v349 = vunpack.c.l.b16 %v253
    %v350 = vunpack.c.l.b16 %v254
    %v351 = vunpack.c.l.b16 %v255
    %v352 = vunpack.c.l.b16 %v256
    %v353 = vunpack.c.l.b16 %v257
    %v354 = vunpack.c.l.b16 %v258
    %v355 = vunpack.c.l.b16 %v259
    %v356 = vunpack.c.l.b16 %v260
    %v357 = vunpack.c.l.b16 %v261
    %v358 = vunpack.c.l.b16 %v262
    %v359 = vunpack.c.l.b16 %v263
    %v360 = vunpack.c.l.b16 %v264
    %v361 = vunpack.c.l.b16 %v265
    %v362 = vunpack.c.l.b16 %v266
    %v363 = vunpack.c.l.b16 %v267
    %v364 = vunpack.c.l.b16 %v268
    %v365 = vunpack.c.l.b16 %v269
    %v366 = vunpack.c.l.b16 %v270
    %v367 = vunpack.c.l.b16 %v271
    %v368 = vunpack.c.l.b16 %v272
    %v369 = vunpack.c.l.b16 %v273
    %v370 = vunpack.c.l.b16 %v274
    %v371 = vunpack.c.l.b16 %v275
    %v372 = vunpack.c.l.b16 %v276
    %v373 = vunpack.c.l.b16 %v277
    %v374 = vunpack.c.l.b16 %v278
    %v375 = vunpack.c.l.b16 %v279
    %v376 = vunpack.c.l.b16 %v280
    %v377 = vunpack.c.l.b16 %v281
    %v378 = vunpack.c.l.b16 %v282
    %v379 = vunpack.c.l.b16 %v283
    %v380 = vunpack.c.l.b16 %v284
    %v381 = vunpack.c.l.b16 %v285
    %v382 = vunpack.c.l.b16 %v286
    %v383 = vunpack.c.l.b16 %v287
    %v384 = vunpack.c.l.b16 %v288
    %v385 = vunpack.c.l.b16 %v289
    %v386 = vunpack.c.l.b16 %v290
    %v387 = vunpack.c.l.b16 %v291
    %v388 = vunpack.c.l.b16 %v292
    %v389 = vunpack.c.l.b16 %v293
    %v390 = vpack.c.b16 %v343, %v342
    %v391 = vpack.c.b16 %v345, %v344
    %v392 = vpack.c.b16 %v347, %v346
    %v393 = vpack.c.b16 %v349, %v348
    %v394 = vpack.c.b16 %v351, %v350
    %v395 = vpack.c.b16 %v353, %v352
    %v396 = vpack.c.b16 %v355, %v354
    %v397 = vpack.c.b16 %v357, %v356
    %v398 = vpack.c.b16 %v359, %v358
    %v399 = vpack.c.b16 %v361, %v360
    %v400 = vpack.c.b16 %v363, %v362
    %v401 = vpack.c.b16 %v365, %v364
    %v402 = vpack.c.b16 %v367, %v366
    %v403 = vpack.c.b16 %v369, %v368
    %v404 = vpack.c.b16 %v371, %v370
    %v405 = vpack.c.b16 %v373, %v372
    %v406 = vpack.c.b16 %v375, %v374
    %v407 = vpack.c.b16 %v377, %v376
    %v408 = vpack.c.b16 %v379, %v378
    %v409 = vpack.c.b16 %v381, %v380
    %v410 = vpack.c.b16 %v383, %v382
    %v411 = vpack.c.b16 %v385, %v384
    %v412 = vpack.c.b16 %v387, %v386
    %v413 = vpack.c.b16 %v389, %v388
    %438 = vmatprep.subr.bf16.mxu0 0
    %439 = vmatpush1.bf16.msra.mxu0 %v390
    %440 = vmatprep.subr.bf16.mxu0 0
    %441 = vmatpush1.bf16.msra.mxu0 %v391
    %442 = vmatprep.subr.bf16.mxu0 0
    %443 = vmatpush1.bf16.msra.mxu0 %v392
    %444 = vmatprep.subr.bf16.mxu0 0
    %445 = vmatpush1.bf16.msra.mxu0 %v393
    %446 = vmatprep.subr.bf16.mxu0 0
    %447 = vmatpush1.bf16.msra.mxu0 %v394
    %448 = vmatprep.subr.bf16.mxu0 0
    %449 = vmatpush1.bf16.msra.mxu0 %v395
    %450 = vmatprep.subr.bf16.mxu0 0
    %451 = vmatpush1.bf16.msra.mxu0 %v396
    %452 = vmatprep.subr.bf16.mxu0 0
    %453 = vmatpush1.bf16.msra.mxu0 %v397
    %454 = vmatprep.subr.bf16.mxu0 0
    %455 = vmatpush1.bf16.msra.mxu0 %v398
    %456 = vmatprep.subr.bf16.mxu0 0
    %457 = vmatpush1.bf16.msra.mxu0 %v399
    %458 = vmatprep.subr.bf16.mxu0 0
    %459 = vmatpush1.bf16.msra.mxu0 %v400
    %460 = vmatprep.subr.bf16.mxu0 0
    %461 = vmatpush1.bf16.msra.mxu0 %v401
    %462 = vmatprep.subr.bf16.mxu0 0
    %463 = vmatpush1.bf16.msra.mxu0 %v402
    %464 = vmatprep.subr.bf16.mxu0 0
    %465 = vmatpush1.bf16.msra.mxu0 %v403
    %466 = vmatprep.subr.bf16.mxu0 0
    %467 = vmatpush1.bf16.msra.mxu0 %v404
    %468 = vmatprep.subr.bf16.mxu0 0
    %469 = vmatpush1.bf16.msra.mxu0 %v405
    %470 = vmatprep.mubr.bf16.mxu0 %v117
    %471 = vmatmul.mubr.bf16.gmra.mrb[0].mxu0 %v177
    %v472 = vpop.f32.mrb[0].mxu0
    %v473 = vadd.f32 0.0, %v472
    %v474 = vpop.f32.mrb[0].mxu0
    %v475 = vpop.f32.mrb[0].mxu0
    %v476 = vadd.f32 0.0, %v475
    %v477 = vpop.f32.mrb[0].mxu0
    %478 = vmatprep.mubr.bf16.mxu0 %v118
    %479 = vmatmul.mubr.bf16.gmra.mrb[0].mxu0 %v178
    %v480 = vpop.f32.mrb[0].mxu0
    %v481 = vadd.f32 0.0, %v480
    %v482 = vpop.f32.mrb[0].mxu0
    %v483 = vpop.f32.mrb[0].mxu0
    %v484 = vadd.f32 0.0, %v483
    %v485 = vpop.f32.mrb[0].mxu0
    %486 = vdwg.mxu0
    %487 = vmatprep.subr.bf16.mxu0 0
    %488 = vmatpush1.bf16.msra.mxu0 %v406
    %489 = vmatprep.subr.bf16.mxu0 0
    %490 = vmatpush1.bf16.msra.mxu0 %v407
    %491 = vmatprep.subr.bf16.mxu0 0
    %492 = vmatpush1.bf16.msra.mxu0 %v408
    %493 = vmatprep.subr.bf16.mxu0 0
    %494 = vmatpush1.bf16.msra.mxu0 %v409
    %495 = vmatprep.subr.bf16.mxu0 0
    %496 = vmatpush1.bf16.msra.mxu0 %v410
    %497 = vmatprep.subr.bf16.mxu0 0
    %498 = vmatpush1.bf16.msra.mxu0 %v411
    %499 = vmatprep.subr.bf16.mxu0 0
    %500 = vmatpush1.bf16.msra.mxu0 %v412
    %501 = vmatprep.subr.bf16.mxu0 0
    %502 = vmatpush1.bf16.msra.mxu0 %v413
    %503 = vmatprep.subr.bf16.mxu0 0
    %504 = vmatpush1.bf16.msra.mxu0 0
    %505 = vmatprep.subr.bf16.mxu0 0
    %506 = vmatpush1.bf16.msra.mxu0 0
    %507 = vmatprep.subr.bf16.mxu0 0
    %508 = vmatpush1.bf16.msra.mxu0 0
    %509 = vmatprep.subr.bf16.mxu0 0
    %510 = vmatpush1.bf16.msra.mxu0 0
    %511 = vmatprep.subr.bf16.mxu0 0
    %512 = vmatpush1.bf16.msra.mxu0 0
    %513 = vmatprep.subr.bf16.mxu0 0
    %514 = vmatpush1.bf16.msra.mxu0 0
    %515 = vmatprep.subr.bf16.mxu0 0
    %516 = vmatpush1.bf16.msra.mxu0 0
    %517 = vmatprep.subr.bf16.mxu0 0
    %518 = vmatpush1.bf16.msra.mxu0 0
    %519 = vmatprep.mubr.bf16.mxu0 0
    %520 = vmatmul.mubr.bf16.gmra.mrb[0].mxu0 %v244
    %v521 = vpop.f32.mrb[0].mxu0
    %v522 = vadd.f32 %v473, %v521
    %v523 = vpop.f32.mrb[0].mxu0
    %v524 = vpop.f32.mrb[0].mxu0
    %v525 = vadd.f32 %v476, %v524
    %v526 = vpop.f32.mrb[0].mxu0
    %527 = vmatprep.mubr.bf16.mxu0 0
    %528 = vmatmul.mubr.bf16.gmra.mrb[0].mxu0 %v245
    %v529 = vpop.f32.mrb[0].mxu0
    %v530 = vadd.f32 %v481, %v529
    %v531 = vpop.f32.mrb[0].mxu0
    %v532 = vpop.f32.mrb[0].mxu0
    %v533 = vadd.f32 %v484, %v532
    %v534 = vpop.f32.mrb[0].mxu0
    %535 = vdwg.mxu0
    %v536 = vld [vmem:[%s4] sm:$0x1]
    %v538 = vlaneseq
    %v539 = vshrl.u32 %v538, 7
    %v540 = vsub.s32 0, %v539
    %v541 = vrot.slane %v536, %v540
    %v543 = vmul.f32 %v522, %v541
    %v544 = vmul.f32 %v525, %v541
    %v545 = vmul.f32 %v530, %v541
    %v546 = vmul.f32 %v533, %v541
    %v547 = vld [vmem:[%s5] sm:$0x1]
    %v549 = vlaneseq
    %v550 = vshrl.u32 %v549, 7
    %v551 = vsub.s32 0, %v550
    %v552 = vrot.slane %v547, %v551
    %v554 = vadd.f32 %v543, %v552
    %v555 = vadd.f32 %v544, %v552
    %v556 = vadd.f32 %v545, %v552
    %v557 = vadd.f32 %v546, %v552
    %v558 = vmax.f32 %v554, 0.0
    %v559 = vmax.f32 %v555, 0.0
    %v560 = vmax.f32 %v556, 0.0
    %v561 = vmax.f32 %v557, 0.0
    %v562 = vpack.c.bf16 %v559, %v558
    %v563 = vpack.c.bf16 %v561, %v560
    %564 = vmatprep.subr.bf16.mxu0 0
    %565 = vmatpush1.bf16.msra.mxu0 %v562
    %566 = vmatprep.subr.bf16.mxu0 0
    %567 = vmatpush1.bf16.msra.mxu0 %v563
    %568 = vmatprep.subr.bf16.mxu0 0
    %569 = vmatpush1.bf16.msra.mxu0 0
    %570 = vmatprep.subr.bf16.mxu0 0
    %571 = vmatpush1.bf16.msra.mxu0 0
    %572 = vmatprep.subr.bf16.mxu0 0
    %573 = vmatpush1.bf16.msra.mxu0 0
    %574 = vmatprep.subr.bf16.mxu0 0
    %575 = vmatpush1.bf16.msra.mxu0 0
    %576 = vmatprep.subr.bf16.mxu0 0
    %577 = vmatpush1.bf16.msra.mxu0 0
    %578 = vmatprep.subr.bf16.mxu0 0
    %579 = vmatpush1.bf16.msra.mxu0 0
    %580 = vmatprep.subr.bf16.mxu0 0
    %581 = vmatpush1.bf16.msra.mxu0 0
    %582 = vmatprep.subr.bf16.mxu0 0
    %583 = vmatpush1.bf16.msra.mxu0 0
    %584 = vmatprep.subr.bf16.mxu0 0
    %585 = vmatpush1.bf16.msra.mxu0 0
    %586 = vmatprep.subr.bf16.mxu0 0
    %587 = vmatpush1.bf16.msra.mxu0 0
    %588 = vmatprep.subr.bf16.mxu0 0
    %589 = vmatpush1.bf16.msra.mxu0 0
    %590 = vmatprep.subr.bf16.mxu0 0
    %591 = vmatpush1.bf16.msra.mxu0 0
    %592 = vmatprep.subr.bf16.mxu0 0
    %593 = vmatpush1.bf16.msra.mxu0 0
    %594 = vmatprep.subr.bf16.mxu0 0
    %595 = vmatpush1.bf16.msra.mxu0 0
    %596 = vmatprep.mubr.bf16.mxu0 0
    %597 = vmatmul.mubr.bf16.gmra.mrb[0].mxu0 %v123
    %v598 = vpop.f32.mrb[0].mxu0
    %v599 = vadd.f32 0.0, %v598
    %v600 = vpop.f32.mrb[0].mxu0
    %v601 = vpop.f32.mrb[0].mxu0
    %v602 = vadd.f32 0.0, %v601
    %v603 = vpop.f32.mrb[0].mxu0
    %604 = vmatprep.mubr.bf16.mxu0 0
    %605 = vmatmul.mubr.bf16.gmra.mrb[0].mxu0 %v126
    %v606 = vpop.f32.mrb[0].mxu0
    %v607 = vadd.f32 0.0, %v606
    %v608 = vpop.f32.mrb[0].mxu0
    %v609 = vpop.f32.mrb[0].mxu0
    %v610 = vadd.f32 0.0, %v609
    %v611 = vpop.f32.mrb[0].mxu0
    %612 = vdwg.mxu0
    %v613 = vpack.c.bf16 %v602, %v599
    %v614 = vpack.c.bf16 %v610, %v607
    %615 = vmatprep.subr.bf16.mxu0 0
    %616 = vmatpush1.bf16.msra.mxu0 %v562
    %617 = vmatprep.subr.bf16.mxu0 0
    %618 = vmatpush1.bf16.msra.mxu0 %v563
    %619 = vmatprep.subr.bf16.mxu0 0
    %620 = vmatpush1.bf16.msra.mxu0 0
    %621 = vmatprep.subr.bf16.mxu0 0
    %622 = vmatpush1.bf16.msra.mxu0 0
    %623 = vmatprep.subr.bf16.mxu0 0
    %624 = vmatpush1.bf16.msra.mxu0 0
    %625 = vmatprep.subr.bf16.mxu0 0
    %626 = vmatpush1.bf16.msra.mxu0 0
    %627 = vmatprep.subr.bf16.mxu0 0
    %628 = vmatpush1.bf16.msra.mxu0 0
    %629 = vmatprep.subr.bf16.mxu0 0
    %630 = vmatpush1.bf16.msra.mxu0 0
    %631 = vmatprep.subr.bf16.mxu0 0
    %632 = vmatpush1.bf16.msra.mxu0 0
    %633 = vmatprep.subr.bf16.mxu0 0
    %634 = vmatpush1.bf16.msra.mxu0 0
    %635 = vmatprep.subr.bf16.mxu0 0
    %636 = vmatpush1.bf16.msra.mxu0 0
    %637 = vmatprep.subr.bf16.mxu0 0
    %638 = vmatpush1.bf16.msra.mxu0 0
    %639 = vmatprep.subr.bf16.mxu0 0
    %640 = vmatpush1.bf16.msra.mxu0 0
    %641 = vmatprep.subr.bf16.mxu0 0
    %642 = vmatpush1.bf16.msra.mxu0 0
    %643 = vmatprep.subr.bf16.mxu0 0
    %644 = vmatpush1.bf16.msra.mxu0 0
    %645 = vmatprep.subr.bf16.mxu0 0
    %646 = vmatpush1.bf16.msra.mxu0 0
    %647 = vmatprep.mubr.bf16.mxu0 0
    %648 = vmatmul.mubr.bf16.gmra.mrb[0].mxu0 %v190
    %v649 = vpop.f32.mrb[0].mxu0
    %v650 = vadd.f32 0.0, %v649
    %v651 = vpop.f32.mrb[0].mxu0
    %v652 = vpop.f32.mrb[0].mxu0
    %v653 = vadd.f32 0.0, %v652
    %v654 = vpop.f32.mrb[0].mxu0
    %655 = vmatprep.mubr.bf16.mxu0 0
    %656 = vmatmul.mubr.bf16.gmra.mrb[0].mxu0 %v193
    %v657 = vpop.f32.mrb[0].mxu0
    %v658 = vadd.f32 0.0, %v657
    %v659 = vpop.f32.mrb[0].mxu0
    %v660 = vpop.f32.mrb[0].mxu0
    %v661 = vadd.f32 0.0, %v660
    %v662 = vpop.f32.mrb[0].mxu0
    %663 = vdwg.mxu0
    %v664 = vpack.c.bf16 %v653, %v650
    %v665 = vpack.c.bf16 %v661, %v658
    %v666 = vld [vmem:[#allocation8] sm:$0xf]
    %v667 = vld [vmem:[#allocation8 + $0x4] sm:$0xf]
    %v668 = vld [vmem:[#allocation8 + $0x8] sm:$0xf]
    %v669 = vld [vmem:[#allocation8 + $0xc] sm:$0xf]
    %v670 = vld [vmem:[#allocation8 + $0x10] sm:$0xf]
    %v671 = vld [vmem:[#allocation8 + $0x14] sm:$0xf]
    %v672 = vld [vmem:[#allocation8 + $0x18] sm:$0xf]
    %v673 = vld [vmem:[#allocation8 + $0x1c] sm:$0xf]
    %v674 = vld [vmem:[#allocation8 + $0x20] sm:$0xf]
    %v675 = vld [vmem:[#allocation8 + $0x24] sm:$0xf]
    %v676 = vld [vmem:[#allocation8 + $0x28] sm:$0xf]
    %v677 = vld [vmem:[#allocation8 + $0x2c] sm:$0xf]
    %v678 = vld [vmem:[#allocation8 + $0x30] sm:$0xf]
    %v679 = vld [vmem:[#allocation8 + $0x34] sm:$0xf]
    %v680 = vld [vmem:[#allocation8 + $0x38] sm:$0xf]
    %v681 = vld [vmem:[#allocation8 + $0x3c] sm:$0xf]
    %v682 = vld [vmem:[#allocation8 + $0x40] sm:$0xf]
    %v683 = vld [vmem:[#allocation8 + $0x44] sm:$0xf]
    %v684 = vld [vmem:[#allocation8 + $0x48] sm:$0xf]
    %v685 = vld [vmem:[#allocation8 + $0x4c] sm:$0xf]
    %v686 = vld [vmem:[#allocation8 + $0x50] sm:$0xf]
    %v687 = vld [vmem:[#allocation8 + $0x54] sm:$0xf]
    %v688 = vld [vmem:[#allocation8 + $0x58] sm:$0xf]
    %v689 = vld [vmem:[#allocation8 + $0x5c] sm:$0xf]
    %v690 = vld [vmem:[#allocation8 + $0x60] sm:$0xf]
    %v691 = vld [vmem:[#allocation8 + $0x64] sm:$0xf]
    %v692 = vld [vmem:[#allocation8 + $0x68] sm:$0xf]
    %v693 = vld [vmem:[#allocation8 + $0x6c] sm:$0xf]
    %v694 = vld [vmem:[#allocation8 + $0x70] sm:$0xf]
    %v695 = vld [vmem:[#allocation8 + $0x74] sm:$0xf]
    %v696 = vld [vmem:[#allocation8 + $0x78] sm:$0xf]
    %v697 = vld [vmem:[#allocation8 + $0x7c] sm:$0xf]
    %v698 = vld [vmem:[#allocation8 + $0x80] sm:$0xf]
    %v699 = vld [vmem:[#allocation8 + $0x84] sm:$0xf]
    %v700 = vld [vmem:[#allocation8 + $0x88] sm:$0xf]
    %v701 = vld [vmem:[#allocation8 + $0x8c] sm:$0xf]
    %v702 = vld [vmem:[#allocation8 + $0x90] sm:$0xf]
    %v703 = vld [vmem:[#allocation8 + $0x94] sm:$0xf]
    %v704 = vld [vmem:[#allocation8 + $0x98] sm:$0xf]
    %v705 = vld [vmem:[#allocation8 + $0x9c] sm:$0xf]
    %v706 = vld [vmem:[#allocation8 + $0xa0] sm:$0xf]
    %v707 = vld [vmem:[#allocation8 + $0xa4] sm:$0xf]
    %v708 = vld [vmem:[#allocation8 + $0xa8] sm:$0xf]
    %v709 = vld [vmem:[#allocation8 + $0xac] sm:$0xf]
    %v710 = vld [vmem:[#allocation8 + $0xb0] sm:$0xf]
    %v711 = vld [vmem:[#allocation8 + $0xb4] sm:$0xf]
    %v712 = vld [vmem:[#allocation8 + $0xb8] sm:$0xf]
    %v713 = vld [vmem:[#allocation8 + $0xbc] sm:$0xf]
    %v762 = vunpack.c.l.b16 %v666
    %v763 = vunpack.c.l.b16 %v667
    %v764 = vunpack.c.l.b16 %v668
    %v765 = vunpack.c.l.b16 %v669
    %v766 = vunpack.c.l.b16 %v670
    %v767 = vunpack.c.l.b16 %v671
    %v768 = vunpack.c.l.b16 %v672
    %v769 = vunpack.c.l.b16 %v673
    %v770 = vunpack.c.l.b16 %v674
    %v771 = vunpack.c.l.b16 %v675
    %v772 = vunpack.c.l.b16 %v676
    %v773 = vunpack.c.l.b16 %v677
    %v774 = vunpack.c.l.b16 %v678
    %v775 = vunpack.c.l.b16 %v679
    %v776 = vunpack.c.l.b16 %v680
    %v777 = vunpack.c.l.b16 %v681
    %v778 = vunpack.c.l.b16 %v682
    %v779 = vunpack.c.l.b16 %v683
    %v780 = vunpack.c.l.b16 %v684
    %v781 = vunpack.c.l.b16 %v685
    %v782 = vunpack.c.l.b16 %v686
    %v783 = vunpack.c.l.b16 %v687
    %v784 = vunpack.c.l.b16 %v688
    %v785 = vunpack.c.l.b16 %v689
    %v786 = vunpack.c.l.b16 %v690
    %v787 = vunpack.c.l.b16 %v691
    %v788 = vunpack.c.l.b16 %v692
    %v789 = vunpack.c.l.b16 %v693
    %v790 = vunpack.c.l.b16 %v694
    %v791 = vunpack.c.l.b16 %v695
    %v792 = vunpack.c.l.b16 %v696
    %v793 = vunpack.c.l.b16 %v697
    %v794 = vunpack.c.l.b16 %v698
    %v795 = vunpack.c.l.b16 %v699
    %v796 = vunpack.c.l.b16 %v700
    %v797 = vunpack.c.l.b16 %v701
    %v798 = vunpack.c.l.b16 %v702
    %v799 = vunpack.c.l.b16 %v703
    %v800 = vunpack.c.l.b16 %v704
    %v801 = vunpack.c.l.b16 %v705
    %v802 = vunpack.c.l.b16 %v706
    %v803 = vunpack.c.l.b16 %v707
    %v804 = vunpack.c.l.b16 %v708
    %v805 = vunpack.c.l.b16 %v709
    %v806 = vunpack.c.l.b16 %v710
    %v807 = vunpack.c.l.b16 %v711
    %v808 = vunpack.c.l.b16 %v712
    %v809 = vunpack.c.l.b16 %v713
    %v810 = vpack.c.b16 %v763, %v762
    %v811 = vpack.c.b16 %v765, %v764
    %v812 = vpack.c.b16 %v767, %v766
    %v813 = vpack.c.b16 %v769, %v768
    %v814 = vpack.c.b16 %v771, %v770
    %v815 = vpack.c.b16 %v773, %v772
    %v816 = vpack.c.b16 %v775, %v774
    %v817 = vpack.c.b16 %v777, %v776
    %v818 = vpack.c.b16 %v779, %v778
    %v819 = vpack.c.b16 %v781, %v780
    %v820 = vpack.c.b16 %v783, %v782
    %v821 = vpack.c.b16 %v785, %v784
    %v822 = vpack.c.b16 %v787, %v786
    %v823 = vpack.c.b16 %v789, %v788
    %v824 = vpack.c.b16 %v791, %v790
    %v825 = vpack.c.b16 %v793, %v792
    %v826 = vpack.c.b16 %v795, %v794
    %v827 = vpack.c.b16 %v797, %v796
    %v828 = vpack.c.b16 %v799, %v798
    %v829 = vpack.c.b16 %v801, %v800
    %v830 = vpack.c.b16 %v803, %v802
    %v831 = vpack.c.b16 %v805, %v804
    %v832 = vpack.c.b16 %v807, %v806
    %v833 = vpack.c.b16 %v809, %v808
    %858 = vmatprep.subr.bf16.mxu0 0
    %859 = vmatpush1.bf16.msra.mxu0 %v810
    %860 = vmatprep.subr.bf16.mxu0 0
    %861 = vmatpush1.bf16.msra.mxu0 %v811
    %862 = vmatprep.subr.bf16.mxu0 0
    %863 = vmatpush1.bf16.msra.mxu0 %v812
    %864 = vmatprep.subr.bf16.mxu0 0
    %865 = vmatpush1.bf16.msra.mxu0 %v813
    %866 = vmatprep.subr.bf16.mxu0 0
    %867 = vmatpush1.bf16.msra.mxu0 %v814
    %868 = vmatprep.subr.bf16.mxu0 0
    %869 = vmatpush1.bf16.msra.mxu0 %v815
    %870 = vmatprep.subr.bf16.mxu0 0
    %871 = vmatpush1.bf16.msra.mxu0 %v816
    %872 = vmatprep.subr.bf16.mxu0 0
    %873 = vmatpush1.bf16.msra.mxu0 %v817
    %874 = vmatprep.subr.bf16.mxu0 0
    %875 = vmatpush1.bf16.msra.mxu0 %v818
    %876 = vmatprep.subr.bf16.mxu0 0
    %877 = vmatpush1.bf16.msra.mxu0 %v819
    %878 = vmatprep.subr.bf16.mxu0 0
    %879 = vmatpush1.bf16.msra.mxu0 %v820
    %880 = vmatprep.subr.bf16.mxu0 0
    %881 = vmatpush1.bf16.msra.mxu0 %v821
    %882 = vmatprep.subr.bf16.mxu0 0
    %883 = vmatpush1.bf16.msra.mxu0 %v822
    %884 = vmatprep.subr.bf16.mxu0 0
    %885 = vmatpush1.bf16.msra.mxu0 %v823
    %886 = vmatprep.subr.bf16.mxu0 0
    %887 = vmatpush1.bf16.msra.mxu0 %v824
    %888 = vmatprep.subr.bf16.mxu0 0
    %889 = vmatpush1.bf16.msra.mxu0 %v825
    %890 = vmatprep.mubr.bf16.mxu0 %v562
    %891 = vmatmul.mubr.bf16.gmra.mrb[0].mxu0 %v613
    %v892 = vpop.f32.mrb[0].mxu0
    %v893 = vadd.f32 0.0, %v892
    %v894 = vpop.f32.mrb[0].mxu0
    %v895 = vpop.f32.mrb[0].mxu0
    %v896 = vadd.f32 0.0, %v895
    %v897 = vpop.f32.mrb[0].mxu0
    %898 = vmatprep.mubr.bf16.mxu0 %v563
    %899 = vmatmul.mubr.bf16.gmra.mrb[0].mxu0 %v614
    %v900 = vpop.f32.mrb[0].mxu0
    %v901 = vadd.f32 0.0, %v900
    %v902 = vpop.f32.mrb[0].mxu0
    %v903 = vpop.f32.mrb[0].mxu0
    %v904 = vadd.f32 0.0, %v903
    %v905 = vpop.f32.mrb[0].mxu0
    %906 = vdwg.mxu0
    %907 = vmatprep.subr.bf16.mxu0 0
    %908 = vmatpush1.bf16.msra.mxu0 %v826
    %909 = vmatprep.subr.bf16.mxu0 0
    %910 = vmatpush1.bf16.msra.mxu0 %v827
    %911 = vmatprep.subr.bf16.mxu0 0
    %912 = vmatpush1.bf16.msra.mxu0 %v828
    %913 = vmatprep.subr.bf16.mxu0 0
    %914 = vmatpush1.bf16.msra.mxu0 %v829
    %915 = vmatprep.subr.bf16.mxu0 0
    %916 = vmatpush1.bf16.msra.mxu0 %v830
    %917 = vmatprep.subr.bf16.mxu0 0
    %918 = vmatpush1.bf16.msra.mxu0 %v831
    %919 = vmatprep.subr.bf16.mxu0 0
    %920 = vmatpush1.bf16.msra.mxu0 %v832
    %921 = vmatprep.subr.bf16.mxu0 0
    %922 = vmatpush1.bf16.msra.mxu0 %v833
    %923 = vmatprep.subr.bf16.mxu0 0
    %924 = vmatpush1.bf16.msra.mxu0 0
    %925 = vmatprep.subr.bf16.mxu0 0
    %926 = vmatpush1.bf16.msra.mxu0 0
    %927 = vmatprep.subr.bf16.mxu0 0
    %928 = vmatpush1.bf16.msra.mxu0 0
    %929 = vmatprep.subr.bf16.mxu0 0
    %930 = vmatpush1.bf16.msra.mxu0 0
    %931 = vmatprep.subr.bf16.mxu0 0
    %932 = vmatpush1.bf16.msra.mxu0 0
    %933 = vmatprep.subr.bf16.mxu0 0
    %934 = vmatpush1.bf16.msra.mxu0 0
    %935 = vmatprep.subr.bf16.mxu0 0
    %936 = vmatpush1.bf16.msra.mxu0 0
    %937 = vmatprep.subr.bf16.mxu0 0
    %938 = vmatpush1.bf16.msra.mxu0 0
    %939 = vmatprep.mubr.bf16.mxu0 0
    %940 = vmatmul.mubr.bf16.gmra.mrb[0].mxu0 %v664
    %v941 = vpop.f32.mrb[0].mxu0
    %v942 = vadd.f32 %v893, %v941
    %v943 = vpop.f32.mrb[0].mxu0
    %v944 = vpop.f32.mrb[0].mxu0
    %v945 = vadd.f32 %v896, %v944
    %v946 = vpop.f32.mrb[0].mxu0
    %947 = vmatprep.mubr.bf16.mxu0 0
    %948 = vmatmul.mubr.bf16.gmra.mrb[0].mxu0 %v665
    %v949 = vpop.f32.mrb[0].mxu0
    %v950 = vadd.f32 %v901, %v949
    %v951 = vpop.f32.mrb[0].mxu0
    %v952 = vpop.f32.mrb[0].mxu0
    %v953 = vadd.f32 %v904, %v952
    %v954 = vpop.f32.mrb[0].mxu0
    %955 = vdwg.mxu0
    %v956 = vld [vmem:[%s6] sm:$0x1]
    %v958 = vlaneseq
    %v959 = vshrl.u32 %v958, 7
    %v960 = vsub.s32 0, %v959
    %v961 = vrot.slane %v956, %v960
    %v963 = vmul.f32 %v942, %v961
    %v964 = vmul.f32 %v945, %v961
    %v965 = vmul.f32 %v950, %v961
    %v966 = vmul.f32 %v953, %v961
    %v967 = vld [vmem:[%s7] sm:$0x1]
    %v969 = vlaneseq
    %v970 = vshrl.u32 %v969, 7
    %v971 = vsub.s32 0, %v970
    %v972 = vrot.slane %v967, %v971
    %v974 = vadd.f32 %v963, %v972
    %v975 = vadd.f32 %v964, %v972
    %v976 = vadd.f32 %v965, %v972
    %v977 = vadd.f32 %v966, %v972
    %v978 = vunpack.c.l.bf16 %v86
    %v979 = vunpack.c.l.bf16 %v87
    %v980 = vunpack.c.l.bf16 %v88
    %v981 = vunpack.c.l.bf16 %v89
    %v982 = vadd.f32 %v974, %v978
    %v983 = vadd.f32 %v975, %v979
    %v984 = vadd.f32 %v976, %v980
    %v985 = vadd.f32 %v977, %v981
    %v986 = vmax.f32 %v982, 0.0
    %v987 = vmax.f32 %v983, 0.0
    %v988 = vmax.f32 %v984, 0.0
    %v989 = vmax.f32 %v985, 0.0
    %v990 = vpack.c.bf16 %v987, %v986
    %v991 = vpack.c.bf16 %v989, %v988
    %v994 = vunpack.c.l.b16 %v990
    %v995 = vunpack.c.h.b16 %v990
    %v996 = vunpack.c.l.b16 %v991
    %v997 = vunpack.c.h.b16 %v991
    %v998 = vpack.c.b16 %v994, %v994
    %v999 = vpack.c.b16 %v995, %v995
    %v1000 = vpack.c.b16 %v996, %v996
    %v1001 = vpack.c.b16 %v997, %v997
    %1006 = vst [vmem:[#allocation10] sm:$0xf] %v998
    %1007 = vst [vmem:[#allocation10 + $0x4] sm:$0xf] %v999
    %1008 = vst [vmem:[#allocation10 + $0x8] sm:$0xf] %v1000
    %1009 = vst [vmem:[#allocation10 + $0xc] sm:$0xf] %v1001
    // Predicated region
    $region50: #{tpu_custom_call.1} parent=1 // pred_check
      _
    $region51: #{tpu_custom_call.1} parent=1 // pred_check_branch
      %1011 = sbr.rel (0) target = $region53
    $region52: #{tpu_custom_call.1} parent=1 // pred_region
      %s1013 = ssub.s32 256, 256
      %1014 = vsyncadd [#allocation4], %s1013
      %s1015 = sshll.u32 [#allocation10], 4
      %s1016 = int_to_ptr.vmem [resolvable:$true] %s1015
      %1021 = dma.vmem_to_hbm [thread:$0]  %s1016, 256, %s8, [#allocation4], 64, 64, 4
    $region53: #{tpu_custom_call.1} parent=1 // pred_fallthru
      _
    // Predicated region
    $region54: #{tpu_custom_call.1} parent=1 // pred_check
      _
    $region55: #{tpu_custom_call.1} parent=1 // pred_check_branch
      %1023 = sbr.rel (0) target = $region57
    $region56: #{tpu_custom_call.1} parent=1 // pred_region
      %1024 = dma.done [#allocation4], 256
    $region57: #{tpu_custom_call.1} parent=1 // pred_fallthru
      _
    %1025 = vsyncpa [#allocation3], 1
    %1026 = vsyncpa [#allocation6], 1
    %1027 = vsyncpa [#allocation9], 1
    %1028 = vsyncpa [#allocation4], 1

</llo_original>
